<compile_context>
chip_gen: v7x
topology: tpu7x:2x2x1
jax: 0.10.0
libtpu: 0.0.40
codegen_flags: <defaults>
</compile_context>

<pallas_src>
import functools

import jax
import jax.numpy as jnp
from jax.experimental import pallas as pl
from jax.experimental.pallas import tpu as pltpu


_VMEM_LIMIT = 48 * 1024 * 1024   # fits v7x's 64 MiB physical VMEM w/ headroom


def _round_up(x, m):
    return ((x + m - 1) // m) * m


def _tiles(n):
    """Padded node count and (dest-row tile, source-col tile)."""
    if n <= 256:
        npad = max(8, _round_up(n, 8))
        return npad, npad, npad
    npad = _round_up(n, 512)
    return npad, 256, 512


# ---------------------------------------------------------------------------
# Kernel A: fused per-node projections for one GATConv layer (row-tiled).
# One MXU pass over the concatenated weight [W | V | U]:
#   r      [tile, hd + 2*heads] = x_tile(bf16) @ W_fused(bf16)   (f32 accum)
#   f      = r[:, :hd]                 (stored bf16 for the aggregation MXU)
#   a_dst  = r[:, hd : hd+heads]       (V[:, h] = W_h @ att_dst_h)
#   a_src  = r[:, hd+heads : hd+2h]    (U[:, h] = W_h @ att_src_h)
# ---------------------------------------------------------------------------
def gat_project_kernel(x_ref, w_ref, f_ref, adst_ref, asrc_ref, *, heads, dim):
    x = x_ref[...].astype(jnp.bfloat16)
    r = jnp.dot(x, w_ref[...], preferred_element_type=jnp.float32)
    hd = heads * dim
    f_ref[...] = r[:, :hd].astype(jnp.bfloat16)
    adst_ref[...] = r[:, hd:hd + heads]
    asrc_ref[...] = r[:, hd + heads:hd + 2 * heads]


# ---------------------------------------------------------------------------
# Kernel B: masked attention + aggregation, grid = (i-tiles, j-tiles).
# Online (flash-style) softmax over the j axis with m/l/acc VMEM scratch;
# i axis is "parallel" (megacore), j axis is "arbitrary" (reduction).
# ---------------------------------------------------------------------------
def gat_attend_kernel(adst_ref, asrcT_ref, f_ref, adj_ref, b_ref, out_ref,
                      m_sc, l_sc, acc_sc, *, heads, dim, concat, apply_elu):
    j = pl.program_id(1)
    nj = pl.num_programs(1)

    @pl.when(j == 0)
    def _init():
        m_sc[...] = jnp.full_like(m_sc, -jnp.inf)
        l_sc[...] = jnp.zeros_like(l_sc)
        acc_sc[...] = jnp.zeros_like(acc_sc)

    # Multiplicative edge mask, converted ONCE per tile (shared by all heads).
    adj = adj_ref[...].astype(jnp.float32)                 # [ti, tj]
    a_dst = adst_ref[...]                                  # [ti, heads] f32
    a_srcT = asrcT_ref[...]                                # [heads, tj] f32
    f_j = f_ref[...]                                       # [tj, heads*dim] bf16

    for h in range(heads):                                 # small & static -> unrolled
        # logits[i, j] = a_dst[i] + a_src[j]; LeakyReLU(0.2) = max(x, 0.2x).
        logits = a_dst[:, h:h + 1] + a_srcT[h:h + 1, :]    # [ti, tj]
        logits = jnp.maximum(logits, 0.2 * logits)

        m_prev = m_sc[:, h:h + 1]                          # [ti, 1]
        m_new = jnp.maximum(m_prev, jnp.max(logits, axis=-1, keepdims=True))
        alpha = jnp.exp(m_prev - m_new)                    # rescale old stats
        # TODO(synk): on v6e/v7x this exp could run in bf16 on the EUP for ~2x
        # throughput; kept f32 so the same kernel also lowers on v5e.
        e = adj * jnp.exp(logits - m_new)                  # masked, unnormalized

        l_sc[:, h:h + 1] = alpha * l_sc[:, h:h + 1] + jnp.sum(
            e, axis=-1, keepdims=True)
        sl = slice(h * dim, (h + 1) * dim)
        acc_sc[:, sl] = alpha * acc_sc[:, sl] + jnp.dot(
            e.astype(jnp.bfloat16), f_j[:, sl],
            preferred_element_type=jnp.float32)            # [ti, dim]
        m_sc[:, h:h + 1] = m_new

    @pl.when(j == nj - 1)
    def _finalize():
        bias = b_ref[...]                                  # [1, out_dim]
        if concat:
            # Normalize per head in the pre-laid-out scratch, then one
            # lane-dense store (no cross-lane concatenate).
            for h in range(heads):
                sl = slice(h * dim, (h + 1) * dim)
                inv = pl.reciprocal(l_sc[:, h:h + 1], approx=True)  # EUP slot
                acc_sc[:, sl] = acc_sc[:, sl] * inv
            y = acc_sc[...] + bias
        else:
            y = jnp.zeros_like(acc_sc[:, 0:dim])
            for h in range(heads):
                sl = slice(h * dim, (h + 1) * dim)
                inv = pl.reciprocal(l_sc[:, h:h + 1], approx=True)
                y = y + acc_sc[:, sl] * inv
            y = y * (1.0 / heads) + bias
        if apply_elu:
            # ELU; clamp before exp so the discarded branch never produces inf.
            y = jnp.where(y > 0, y, jnp.exp(jnp.minimum(y, 0.0)) - 1.0)
        out_ref[...] = y.astype(out_ref.dtype)


def gat_layer(x, W, att_src, att_dst, bias, adj_i8, *, heads, dim, concat,
              apply_elu, out_dtype, tile_i, tile_j):
    """One GATConv layer: tiny einsum glue in JAX, hot path in two Pallas calls."""
    Np, F_in = x.shape
    hd = heads * dim
    Wr = W.reshape(F_in, heads, dim)
    V = jnp.einsum("fhd,hd->fh", Wr, att_dst)    # [F_in, heads]  (tiny glue)
    U = jnp.einsum("fhd,hd->fh", Wr, att_src)    # [F_in, heads]
    W_fused = jnp.concatenate([W, V, U], axis=1).astype(jnp.bfloat16)
    out_dim = hd if concat else dim
    bias2d = bias.reshape(1, out_dim).astype(jnp.float32)

    cp_a = pltpu.CompilerParams(dimension_semantics=("parallel",),
                                vmem_limit_bytes=_VMEM_LIMIT)
    cp_b = pltpu.CompilerParams(dimension_semantics=("parallel", "arbitrary"),
                                vmem_limit_bytes=_VMEM_LIMIT)

    # --- Kernel A: fused projections (row-tiled; weights stay resident) ----
    f_bf, a_dst, a_src = pl.pallas_call(
        functools.partial(gat_project_kernel, heads=heads, dim=dim),
        out_shape=(jax.ShapeDtypeStruct((Np, hd), jnp.bfloat16),
                   jax.ShapeDtypeStruct((Np, heads), jnp.float32),
                   jax.ShapeDtypeStruct((Np, heads), jnp.float32)),
        grid=(Np // tile_i,),
        in_specs=[pl.BlockSpec((tile_i, F_in), lambda i: (i, 0)),
                  pl.BlockSpec((F_in, hd + 2 * heads), lambda i: (0, 0))],
        out_specs=(pl.BlockSpec((tile_i, hd), lambda i: (i, 0)),
                   pl.BlockSpec((tile_i, heads), lambda i: (i, 0)),
                   pl.BlockSpec((tile_i, heads), lambda i: (i, 0))),
        compiler_params=cp_a,
    )(x, W_fused)

    # Tiny [Np, heads] -> [heads, Np] transpose in XLA.
    # TODO(synk): fold into Kernel A (XLU transpose) to drop this micro-launch.
    a_srcT = a_src.T

    # --- Kernel B: online-softmax attention + aggregation -------------------
    kernel = functools.partial(gat_attend_kernel, heads=heads, dim=dim,
                               concat=concat, apply_elu=apply_elu)
    out = pl.pallas_call(
        kernel,
        out_shape=jax.ShapeDtypeStruct((Np, out_dim), out_dtype),
        grid=(Np // tile_i, Np // tile_j),
        in_specs=[pl.BlockSpec((tile_i, heads), lambda i, j: (i, 0)),
                  pl.BlockSpec((heads, tile_j), lambda i, j: (0, j)),
                  pl.BlockSpec((tile_j, hd), lambda i, j: (j, 0)),
                  pl.BlockSpec((tile_i, tile_j), lambda i, j: (i, j)),
                  pl.BlockSpec((1, out_dim), lambda i, j: (0, 0))],
        out_specs=pl.BlockSpec((tile_i, out_dim), lambda i, j: (i, 0)),
        scratch_shapes=[pltpu.VMEM((tile_i, heads), jnp.float32),   # m
                        pltpu.VMEM((tile_i, heads), jnp.float32),   # l
                        pltpu.VMEM((tile_i, hd), jnp.float32)],     # acc
        compiler_params=cp_b,
    )(a_dst, a_srcT, f_bf, adj_i8, bias2d)
    return out


def gat_forward(x, adj_i8, params, *, heads, hidden, out_channels):
    """Eval-mode forward: dropout layers are identities."""
    N = x.shape[0]
    Np, tile_i, tile_j = _tiles(N)
    pad = Np - N
    if pad:
        x = jnp.pad(x, ((0, pad), (0, 0)))
        adj_i8 = jnp.pad(adj_i8, ((0, pad), (0, pad)))
        # Self-loops on padded rows keep their (discarded) softmax rows finite.
        adj_i8 = jnp.maximum(adj_i8, jnp.eye(Np, dtype=adj_i8.dtype))

    h = gat_layer(x, params["W1"], params["att_src1"], params["att_dst1"],
                  params["b1"], adj_i8, heads=heads, dim=hidden, concat=True,
                  apply_elu=True, out_dtype=jnp.bfloat16,
                  tile_i=tile_i, tile_j=tile_j)
    # TODO(synk): fuse both layers into one pallas_call keeping h resident in
    # VMEM when N*heads*hidden fits the chip's VMEM; kept separate for clarity.
    y = gat_layer(h, params["W2"], params["att_src2"], params["att_dst2"],
                  params["b2"], adj_i8, heads=1, dim=out_channels,
                  concat=False, apply_elu=False, out_dtype=jnp.float32,
                  tile_i=tile_i, tile_j=tile_j)
    return y[:N]


def glorot(key, shape):
    fan_in, fan_out = shape[-2], shape[-1]
    limit = (6.0 / (fan_in + fan_out)) ** 0.5
    return jax.random.uniform(key, shape, jnp.float32, -limit, limit)


if __name__ == "__main__":
    N = 32               # nodes
    IN_CH = 16
    HIDDEN = 8
    HEADS = 8
    OUT_CH = 4

    key = jax.random.PRNGKey(0)
    kx, ke1, ke2, kw1, ka1, ka2, kw2, ka3, ka4 = jax.random.split(key, 9)

    # node features
    x = jax.random.normal(kx, (N, IN_CH), jnp.float32)

    # deterministic edge_index: a ring plus 16 random edges -> [2, E]
    ring_src = jnp.arange(N, dtype=jnp.int32)
    ring_dst = (ring_src + 1) % N
    rand_src = jax.random.randint(ke1, (16,), 0, N, dtype=jnp.int32)
    rand_dst = jax.random.randint(ke2, (16,), 0, N, dtype=jnp.int32)
    edge_index = jnp.stack([jnp.concatenate([ring_src, rand_src]),
                            jnp.concatenate([ring_dst, rand_dst])])

    # glue: edge_index -> dense adjacency mask, adj[i, j]=1 for edge j->i,
    # plus self loops (GATConv default add_self_loops=True).  Self-loops also
    # guarantee every softmax row has at least one unmasked entry.  int8
    # quarters the dominant [N, N] HBM stream vs f32.
    adj = jnp.zeros((N, N), jnp.int8).at[edge_index[1], edge_index[0]].set(1)
    adj = jnp.maximum(adj, jnp.eye(N, dtype=jnp.int8))

    params = {
        # gat1: GATConv(IN_CH, HIDDEN, heads=HEADS, concat=True)
        "W1": glorot(kw1, (IN_CH, HEADS * HIDDEN)),
        "att_src1": glorot(ka1, (HEADS, HIDDEN)),
        "att_dst1": glorot(ka2, (HEADS, HIDDEN)),
        "b1": jnp.zeros((HEADS * HIDDEN,), jnp.float32),
        # gat2: GATConv(HEADS*HIDDEN, OUT_CH, heads=1, concat=False)
        "W2": glorot(kw2, (HEADS * HIDDEN, OUT_CH)),
        "att_src2": glorot(ka3, (1, OUT_CH)),
        "att_dst2": glorot(ka4, (1, OUT_CH)),
        "b2": jnp.zeros((OUT_CH,), jnp.float32),
    }

    out = gat_forward(x, adj, params, heads=HEADS, hidden=HIDDEN,
                      out_channels=OUT_CH)
    out = jax.block_until_ready(out)
    assert out.shape == (N, OUT_CH), out.shape
    assert jnp.all(jnp.isfinite(out))
    print("KERNEL_OK")
</pallas_src>

<mosaic_0001>
module attributes {stable_mosaic.version = 11 : i64} {
  func.func @gat_project_kernel(%arg0: i32, %arg1: memref<32x16xf32, #tpu.memory_space<vmem>>, %arg2: memref<16x80xbf16, #tpu.memory_space<vmem>>, %arg3: memref<32x64xbf16, #tpu.memory_space<vmem>>, %arg4: memref<32x8xf32, #tpu.memory_space<vmem>>, %arg5: memref<32x8xf32, #tpu.memory_space<vmem>>) attributes {dimension_semantics = [#tpu.dimension_semantics<parallel>], iteration_bounds = array<i64: 1>, scalar_prefetch = 0 : i64, scratch_operands = 0 : i64, tpu.core_type = #tpu.core_type<tc>, window_params = [{transform_indices = @transform_0, window_bounds = array<i64: 32, 16>}, {pipeline_mode = #tpu.pipeline_mode<synchronous>, transform_indices = @transform_1, window_bounds = array<i64: 16, 80>}, {transform_indices = @transform_2, window_bounds = array<i64: 32, 64>}, {transform_indices = @transform_3, window_bounds = array<i64: 32, 8>}, {transform_indices = @transform_4, window_bounds = array<i64: 32, 8>}]} {
    %c0 = arith.constant 0 : index
    %c0_0 = arith.constant 0 : index
    %0 = vector.load %arg1[%c0, %c0_0] : memref<32x16xf32, #tpu.memory_space<vmem>>, vector<32x16xf32>
    %1 = arith.truncf %0 : vector<32x16xf32> to vector<32x16xbf16>
    %c0_1 = arith.constant 0 : index
    %c0_2 = arith.constant 0 : index
    %2 = vector.load %arg2[%c0_1, %c0_2] : memref<16x80xbf16, #tpu.memory_space<vmem>>, vector<16x80xbf16>
    %cst = arith.constant dense<0.000000e+00> : vector<32x80xf32>
    %3 = tpu.matmul %1, %2, %cst {dimension_numbers = #tpu.dot_dimension_numbers<[1], [0], [0], [1], [0, 0, 1, 1], [], []>} : vector<32x16xbf16>, vector<16x80xbf16>, vector<32x80xf32> -> vector<32x80xf32>
    %4 = vector.extract_strided_slice %3 {offsets = [0, 0], sizes = [32, 64], strides = [1, 1]} : vector<32x80xf32> to vector<32x64xf32>
    %5 = arith.truncf %4 : vector<32x64xf32> to vector<32x64xbf16>
    %c0_3 = arith.constant 0 : index
    %c0_4 = arith.constant 0 : index
    %6 = vector.load %arg3[%c0_3, %c0_4] : memref<32x64xbf16, #tpu.memory_space<vmem>>, vector<32x64xbf16>
    tpu.vector_store %arg3[%c0_3, %c0_4], %5 {strides = array<i32>} : memref<32x64xbf16, #tpu.memory_space<vmem>>, vector<32x64xbf16>,
    %7 = vector.extract_strided_slice %3 {offsets = [0, 64], sizes = [32, 8], strides = [1, 1]} : vector<32x80xf32> to vector<32x8xf32>
    %c0_5 = arith.constant 0 : index
    %c0_6 = arith.constant 0 : index
    %8 = vector.load %arg4[%c0_5, %c0_6] : memref<32x8xf32, #tpu.memory_space<vmem>>, vector<32x8xf32>
    tpu.vector_store %arg4[%c0_5, %c0_6], %7 {strides = array<i32>} : memref<32x8xf32, #tpu.memory_space<vmem>>, vector<32x8xf32>,
    %9 = vector.extract_strided_slice %3 {offsets = [0, 72], sizes = [32, 8], strides = [1, 1]} : vector<32x80xf32> to vector<32x8xf32>
    %c0_7 = arith.constant 0 : index
    %c0_8 = arith.constant 0 : index
    %10 = vector.load %arg5[%c0_7, %c0_8] : memref<32x8xf32, #tpu.memory_space<vmem>>, vector<32x8xf32>
    tpu.vector_store %arg5[%c0_7, %c0_8], %9 {strides = array<i32>} : memref<32x8xf32, #tpu.memory_space<vmem>>, vector<32x8xf32>,
    return
  }
  func.func @transform_0(%arg0: i32) -> (i32, i32) {
    %c0_i32 = arith.constant 0 : i32
    %c0_i32_0 = arith.constant 0 : i32
    return %arg0, %c0_i32 : i32, i32
  }
  func.func @transform_1(%arg0: i32) -> (i32, i32) {
    %c0_i32 = arith.constant 0 : i32
    %c0_i32_0 = arith.constant 0 : i32
    %c0_i32_1 = arith.constant 0 : i32
    return %c0_i32, %c0_i32_0 : i32, i32
  }
  func.func @transform_2(%arg0: i32) -> (i32, i32) {
    %c0_i32 = arith.constant 0 : i32
    %c0_i32_0 = arith.constant 0 : i32
    return %arg0, %c0_i32 : i32, i32
  }
  func.func @transform_3(%arg0: i32) -> (i32, i32) {
    %c0_i32 = arith.constant 0 : i32
    %c0_i32_0 = arith.constant 0 : i32
    return %arg0, %c0_i32 : i32, i32
  }
  func.func @transform_4(%arg0: i32) -> (i32, i32) {
    %c0_i32 = arith.constant 0 : i32
    %c0_i32_0 = arith.constant 0 : i32
    return %arg0, %c0_i32 : i32, i32
  }
}

</mosaic_0001>

<llo_original>
// kernel: tpu_custom_call.1
$region0: #{tpu_custom_call.1}
  #allocation0 [shape = 'u32[]', space=smem, size = 0x4, offset = 0x4, fixed_abs, tag = 'smem constant byte address 0x4 - core index']
  #allocation1 [shape = 'u32[144,128]{1,0:T(1,128)}', space=vmem, size = 0x12000, scoped, tag = 'internal scratch']
  %s0 = inlined_call_operand.vmem [shape: f32[32,16], index: 0, kind: input, shape index: {}]
  %s1 = inlined_call_operand.vmem [shape: bf16[16,80], index: 1, kind: input, shape index: {}]
  %s2 = inlined_call_operand.hbm [shape: bf16[32,64], index: 2, kind: output, shape index: {0}]
  %s3 = inlined_call_operand.vmem [shape: f32[32,8], index: 3, kind: output, shape index: {1}]
  %s4 = inlined_call_operand.vmem [shape: f32[32,8], index: 4, kind: output, shape index: {2}]
  %5 = xla_tuple %s2, %s3, %s4
  %s6 = sld [smem:[#allocation0]]
  $region34: #{tpu_custom_call.1} parent=0
    _
  %s8 = ssub.s32 1, %s6
  %s9 = scalar_select 0, %s8, %s6
  $region1: #{tpu_custom_call.1} parent=0
    #allocation2 [shape = 'u8[8192]{0}', space=vmem, size = 0x2000, scoped, tag = 'output window, operand 0, single buffered']
    #allocation3 [shape = 's32[1]{0}', space=sflag, size = 0x4, scoped, tag = 'scoped memory for tpu_custom_call.1']
    %10 = vsyncpa [#allocation3], 0
    // Predicated region
    $region2: #{tpu_custom_call.1} parent=1 // pred_check
      _
    $region3: #{tpu_custom_call.1} parent=1 // pred_check_branch
      %12 = sbr.rel (0) target = $region5
    $region4: #{tpu_custom_call.1} parent=1 // pred_region
      _
    $region5: #{tpu_custom_call.1} parent=1 // pred_fallthru
      _
    // Predicated region
    $region6: #{tpu_custom_call.1} parent=1 // pred_check
      _
    $region7: #{tpu_custom_call.1} parent=1 // pred_check_branch
      %14 = sbr.rel (0) target = $region9
    $region8: #{tpu_custom_call.1} parent=1 // pred_region
      _
    $region9: #{tpu_custom_call.1} parent=1 // pred_fallthru
      _
    %v16 = vld [vmem:[%s0] sm:$0xff]
    %v17 = vld [vmem:[%s0 + $0x8] sm:$0xff]
    %v18 = vld [vmem:[%s0 + $0x10] sm:$0xff]
    %v19 = vld [vmem:[%s0 + $0x18] sm:$0xff]
    %v20 = vpack.c.bf16 %v17, %v16
    %v21 = vpack.c.bf16 %v19, %v18
    %v22 = vld [vmem:[%s1] sm:$0xf]
    %v23 = vld [vmem:[%s1 + $0x4] sm:$0xf]
    %v26 = vunpack.c.l.b16 %v22
    %v27 = vunpack.c.l.b16 %v23
    %v28 = vpack.c.b16 %v27, %v26
    %vm30 = vcmask 130048
    %v32 = vsel %vm30, %v20, 0
    %v35 = vsel %vm30, %v21, 0
    %37 = vmatprep.subr.bf16.mxu0 0
    %38 = vmatpush1.bf16.msra.mxu0 %v28
    %39 = vmatprep.subr.bf16.mxu0 0
    %40 = vmatpush1.bf16.msra.mxu0 0
    %41 = vmatprep.subr.bf16.mxu0 0
    %42 = vmatpush1.bf16.msra.mxu0 0
    %43 = vmatprep.subr.bf16.mxu0 0
    %44 = vmatpush1.bf16.msra.mxu0 0
    %45 = vmatprep.subr.bf16.mxu0 0
    %46 = vmatpush1.bf16.msra.mxu0 0
    %47 = vmatprep.subr.bf16.mxu0 0
    %48 = vmatpush1.bf16.msra.mxu0 0
    %49 = vmatprep.subr.bf16.mxu0 0
    %50 = vmatpush1.bf16.msra.mxu0 0
    %51 = vmatprep.subr.bf16.mxu0 0
    %52 = vmatpush1.bf16.msra.mxu0 0
    %53 = vmatprep.subr.bf16.mxu0 0
    %54 = vmatpush1.bf16.msra.mxu0 0
    %55 = vmatprep.subr.bf16.mxu0 0
    %56 = vmatpush1.bf16.msra.mxu0 0
    %57 = vmatprep.subr.bf16.mxu0 0
    %58 = vmatpush1.bf16.msra.mxu0 0
    %59 = vmatprep.subr.bf16.mxu0 0
    %60 = vmatpush1.bf16.msra.mxu0 0
    %61 = vmatprep.subr.bf16.mxu0 0
    %62 = vmatpush1.bf16.msra.mxu0 0
    %63 = vmatprep.subr.bf16.mxu0 0
    %64 = vmatpush1.bf16.msra.mxu0 0
    %65 = vmatprep.subr.bf16.mxu0 0
    %66 = vmatpush1.bf16.msra.mxu0 0
    %67 = vmatprep.subr.bf16.mxu0 0
    %68 = vmatpush1.bf16.msra.mxu0 0
    %69 = vmatprep.mubr.bf16.mxu0 0
    %70 = vmatmul.mubr.bf16.gmra.mrb[0].mxu0 %v32
    %v71 = vpop.f32.mrb[0].mxu0
    %v72 = vadd.f32 0.0, %v71
    %v73 = vpop.f32.mrb[0].mxu0
    %v74 = vpop.f32.mrb[0].mxu0
    %v75 = vadd.f32 0.0, %v74
    %v76 = vpop.f32.mrb[0].mxu0
    %77 = vmatprep.mubr.bf16.mxu0 0
    %78 = vmatmul.mubr.bf16.gmra.mrb[0].mxu0 %v35
    %v79 = vpop.f32.mrb[0].mxu0
    %v80 = vadd.f32 0.0, %v79
    %v81 = vpop.f32.mrb[0].mxu0
    %v82 = vpop.f32.mrb[0].mxu0
    %v83 = vadd.f32 0.0, %v82
    %v84 = vpop.f32.mrb[0].mxu0
    %85 = vdwg.mxu0
    %v86 = vpack.c.bf16 %v75, %v72
    %v87 = vpack.c.bf16 %v83, %v80
    %v90 = vunpack.c.l.b16 %v86
    %v91 = vunpack.c.h.b16 %v86
    %v92 = vunpack.c.l.b16 %v87
    %v93 = vunpack.c.h.b16 %v87
    %v94 = vpack.c.b16 %v90, %v90
    %v95 = vpack.c.b16 %v91, %v91
    %v96 = vpack.c.b16 %v92, %v92
    %v97 = vpack.c.b16 %v93, %v93
    %vm102 = vcmask 519168
    %103 = vst.msk [vmem:[#allocation2] sm:$0xf] %vm102, %v94
    %104 = vst.msk [vmem:[#allocation2 + $0x4] sm:$0xf] %vm102, %v95
    %105 = vst.msk [vmem:[#allocation2 + $0x8] sm:$0xf] %vm102, %v96
    %106 = vst.msk [vmem:[#allocation2 + $0xc] sm:$0xf] %vm102, %v97
    %111 = vrot.lane.b32.xlu0 %v72, 64
    %v112 = vpop.permute.xlu0 %111
    %113 = vrot.lane.b32.xlu0 %v75, 64
    %v114 = vpop.permute.xlu0 %113
    %115 = vrot.lane.b32.xlu0 %v80, 64
    %v116 = vpop.permute.xlu0 %115
    %117 = vrot.lane.b32.xlu0 %v83, 64
    %v118 = vpop.permute.xlu0 %117
    %vm123 = vcmask 64512
    %124 = vst.msk [vmem:[%s3] sm:$0xff] %vm123, %v112
    %125 = vst.msk [vmem:[%s3 + $0x8] sm:$0xff] %vm123, %v114
    %126 = vst.msk [vmem:[%s3 + $0x10] sm:$0xff] %vm123, %v116
    %127 = vst.msk [vmem:[%s3 + $0x18] sm:$0xff] %vm123, %v118
    %128 = vrot.lane.b32.xlu0 %v72, 56
    %v129 = vpop.permute.xlu0 %128
    %130 = vrot.lane.b32.xlu0 %v75, 56
    %v131 = vpop.permute.xlu0 %130
    %132 = vrot.lane.b32.xlu0 %v80, 56
    %v133 = vpop.permute.xlu0 %132
    %134 = vrot.lane.b32.xlu0 %v83, 56
    %v135 = vpop.permute.xlu0 %134
    %140 = vst.msk [vmem:[%s4] sm:$0xff] %vm123, %v129
    %141 = vst.msk [vmem:[%s4 + $0x8] sm:$0xff] %vm123, %v131
    %142 = vst.msk [vmem:[%s4 + $0x10] sm:$0xff] %vm123, %v133
    %143 = vst.msk [vmem:[%s4 + $0x18] sm:$0xff] %vm123, %v135
    // Predicated region
    $region10: #{tpu_custom_call.1} parent=1 // pred_check
      _
    $region11: #{tpu_custom_call.1} parent=1 // pred_check_branch
      %145 = sbr.rel (0) target = $region13
    $region12: #{tpu_custom_call.1} parent=1 // pred_region
      %s147 = ssub.s32 256, 256
      %148 = vsyncadd [#allocation3], %s147
      %s149 = sshll.u32 [#allocation2], 4
      %s150 = int_to_ptr.vmem [resolvable:$true] %s149
      %155 = dma.vmem_to_hbm [thread:$0]  %s150, 256, %s2, [#allocation3], 64, 64, 4
    $region13: #{tpu_custom_call.1} parent=1 // pred_fallthru
      _
    // Predicated region
    $region14: #{tpu_custom_call.1} parent=1 // pred_check
      _
    $region15: #{tpu_custom_call.1} parent=1 // pred_check_branch
      %157 = sbr.rel (0) target = $region17
    $region16: #{tpu_custom_call.1} parent=1 // pred_region
      _
    $region17: #{tpu_custom_call.1} parent=1 // pred_fallthru
      _
    // Predicated region
    $region18: #{tpu_custom_call.1} parent=1 // pred_check
      _
    $region19: #{tpu_custom_call.1} parent=1 // pred_check_branch
      %159 = sbr.rel (0) target = $region21
    $region20: #{tpu_custom_call.1} parent=1 // pred_region
      _
    $region21: #{tpu_custom_call.1} parent=1 // pred_fallthru
      _
    // Predicated region
    $region22: #{tpu_custom_call.1} parent=1 // pred_check
      _
    $region23: #{tpu_custom_call.1} parent=1 // pred_check_branch
      %161 = sbr.rel (0) target = $region25
    $region24: #{tpu_custom_call.1} parent=1 // pred_region
      %162 = dma.done [#allocation3], 256
    $region25: #{tpu_custom_call.1} parent=1 // pred_fallthru
      _
    // Predicated region
    $region26: #{tpu_custom_call.1} parent=1 // pred_check
      _
    $region27: #{tpu_custom_call.1} parent=1 // pred_check_branch
      %164 = sbr.rel (0) target = $region29
    $region28: #{tpu_custom_call.1} parent=1 // pred_region
      _
    $region29: #{tpu_custom_call.1} parent=1 // pred_fallthru
      _
    // Predicated region
    $region30: #{tpu_custom_call.1} parent=1 // pred_check
      _
    $region31: #{tpu_custom_call.1} parent=1 // pred_check_branch
      %166 = sbr.rel (0) target = $region33
    $region32: #{tpu_custom_call.1} parent=1 // pred_region
      _
    $region33: #{tpu_custom_call.1} parent=1 // pred_fallthru
      _
    %167 = vsyncpa [#allocation3], 1

</llo_original>
